<compile_context>
chip_gen: v6e
topology: v6e:2x2x1
jax: 0.10.0
libtpu: 0.0.40
codegen_flags: <defaults>
</compile_context>

<pallas_src>
import jax
import jax.numpy as jnp
from jax.experimental import pallas as pl
from jax.experimental.pallas import tpu as pltpu


_LANE = 512        # lane-dense minor dim (multiple of 128)
_MAX_ROWS = 1024   # sublane rows per tile: 1024*512*4B = 2 MiB f32 per buffer


def _sumsq_kernel(a_ref, o_ref, acc_ref):
    """acc += sum(a*a) over the current tile (single-input b == 0 path)."""
    @pl.when(pl.program_id(0) == 0)
    def _init():
        acc_ref[0, 0] = jnp.float32(0.0)

    x = a_ref[...].astype(jnp.float32)
    acc_ref[0, 0] += jnp.sum(x * x)

    @pl.when(pl.program_id(0) == pl.num_programs(0) - 1)
    def _done():
        o_ref[0, 0] = acc_ref[0, 0]


def _sumsq_diff_kernel(a_ref, b_ref, o_ref, acc_ref):
    """acc += sum((a - b)^2) over the current tile."""
    @pl.when(pl.program_id(0) == 0)
    def _init():
        acc_ref[0, 0] = jnp.float32(0.0)

    d = a_ref[...].astype(jnp.float32) - b_ref[...].astype(jnp.float32)
    acc_ref[0, 0] += jnp.sum(d * d)

    @pl.when(pl.program_id(0) == pl.num_programs(0) - 1)
    def _done():
        o_ref[0, 0] = acc_ref[0, 0]


def _tile_geometry(total):
    """Pick (rows_padded, rows_per_tile, n_tiles) for a (rows, _LANE) slab."""
    rows = max(-(-total // _LANE), 1)          # ceil(total / LANE)
    # Either the full row extent (any value OK when block == full dim) or a
    # fixed 1024-row tile (multiple of 8 -> satisfies the (8,128) rule).
    tr = rows if rows <= _MAX_ROWS else _MAX_ROWS
    n_tiles = -(-rows // tr)
    rows_padded = n_tiles * tr
    return rows_padded, tr, n_tiles


def _to_slab(x, rows_padded):
    """Flatten x (keeping its dtype) into a zero-padded (rows_padded, _LANE) slab."""
    flat = x.reshape(-1)
    pad = rows_padded * _LANE - flat.shape[0]
    if pad:
        flat = jnp.pad(flat, (0, pad))
    return flat.reshape(rows_padded, _LANE)


def _total_sumsq(slabs, kernel, tr, n_tiles):
    """Run the streaming reduction kernel; returns the global f32 sum of squares."""
    in_specs = [pl.BlockSpec((tr, _LANE), lambda i: (i, 0)) for _ in slabs]
    out = pl.pallas_call(
        kernel,
        out_shape=jax.ShapeDtypeStruct((1, 1), jnp.float32),
        grid_spec=pltpu.PrefetchScalarGridSpec(
            num_scalar_prefetch=0,
            grid=(n_tiles,),
            in_specs=in_specs,
            out_specs=pl.BlockSpec(
                (1, 1), lambda i: (0, 0), memory_space=pltpu.SMEM),
            scratch_shapes=[pltpu.SMEM((1, 1), jnp.float32)],
        ),
        compiler_params=pltpu.CompilerParams(
            dimension_semantics=("arbitrary",)),
    )(*slabs)
    return out[0, 0]


def squared_frobenius_loss(a, b=0, loss_weight=1.0, return_mean=True):
    """Pallas implementation of SquaredFrobeniusLoss.forward (real dtypes)."""
    a = jnp.asarray(a)
    if jnp.iscomplexobj(a):
        # TODO(synk): complex inputs need d * conj(d); only real dtypes handled.
        raise NotImplementedError("complex inputs are not supported")

    # Default b == 0 (static Python scalar): single-input kernel, no zero
    # tensor is ever materialized or streamed.
    b_is_static_zero = isinstance(b, (int, float)) and b == 0

    if b_is_static_zero:
        shape = a.shape
    else:
        b = jnp.asarray(b)
        shape = jnp.broadcast_shapes(a.shape, b.shape)

    if len(shape) < 2:
        raise ValueError("inputs must have at least 2 dims")

    n_mats = 1
    for d in shape[:-2]:
        n_mats *= d
    total = 1
    for d in shape:
        total *= d

    if total == 0:
        total_sumsq = jnp.float32(0.0)
    else:
        rows_padded, tr, n_tiles = _tile_geometry(total)
        if b_is_static_zero:
            slabs = (_to_slab(jnp.broadcast_to(a, shape), rows_padded),)
            kernel = _sumsq_kernel
        else:
            slabs = (_to_slab(jnp.broadcast_to(a, shape), rows_padded),
                     _to_slab(jnp.broadcast_to(b, shape), rows_padded))
            kernel = _sumsq_diff_kernel
        total_sumsq = _total_sumsq(slabs, kernel, tr, n_tiles)

    if return_mean:
        out = total_sumsq / jnp.float32(n_mats)
    else:
        out = total_sumsq
    return jnp.asarray(loss_weight, jnp.float32) * out


if __name__ == "__main__":
    key = jax.random.PRNGKey(0)
    ka, kb = jax.random.split(key)

    # Small shapes consistent with the module: leading batch dims + (M, N).
    a = jax.random.normal(ka, (2, 4, 16, 16), dtype=jnp.float32)
    b = jax.random.normal(kb, (2, 4, 16, 16), dtype=jnp.float32)

    loss = jax.block_until_ready(
        squared_frobenius_loss(a, b, loss_weight=1.0, return_mean=True))
    ref = jnp.mean(jnp.sum(jnp.abs(a - b) ** 2, axis=(-2, -1)))
    assert jnp.allclose(loss, ref, rtol=1e-5, atol=1e-5), (loss, ref)

    # Default b = 0 path (single-input kernel, no zero tensor streamed).
    loss0 = jax.block_until_ready(squared_frobenius_loss(a))
    ref0 = jnp.mean(jnp.sum(jnp.abs(a) ** 2, axis=(-2, -1)))
    assert jnp.allclose(loss0, ref0, rtol=1e-5, atol=1e-5), (loss0, ref0)

    # Ragged total size exercises the zero-pad path; also return_mean=False.
    a2 = jax.random.normal(ka, (3, 5, 7, 9), dtype=jnp.float32)
    b2 = jax.random.normal(kb, (3, 5, 7, 9), dtype=jnp.float32)
    loss2 = jax.block_until_ready(
        squared_frobenius_loss(a2, b2, loss_weight=0.5, return_mean=False))
    ref2 = 0.5 * jnp.sum(jnp.sum(jnp.abs(a2 - b2) ** 2, axis=(-2, -1)))
    assert jnp.allclose(loss2, ref2, rtol=1e-5, atol=1e-5), (loss2, ref2)

    # bf16 inputs stream as bf16 (half the HBM bytes) and accumulate in f32.
    a3 = a.astype(jnp.bfloat16)
    b3 = b.astype(jnp.bfloat16)
    loss3 = jax.block_until_ready(squared_frobenius_loss(a3, b3))
    ref3 = jnp.mean(jnp.sum(
        (a3.astype(jnp.float32) - b3.astype(jnp.float32)) ** 2, axis=(-2, -1)))
    assert jnp.allclose(loss3, ref3, rtol=1e-2, atol=1e-2), (loss3, ref3)

    print("KERNEL_OK")
</pallas_src>

<mosaic_0001>
module attributes {stable_mosaic.version = 11 : i64} {
  func.func @_sumsq_diff_kernel(%arg0: i32, %arg1: memref<4x512xf32, #tpu.memory_space<vmem>>, %arg2: memref<4x512xf32, #tpu.memory_space<vmem>>, %arg3: memref<1x1xf32, #tpu.memory_space<smem>>, %arg4: memref<1x1xf32, #tpu.memory_space<smem>>) attributes {dimension_semantics = [#tpu.dimension_semantics<arbitrary>], iteration_bounds = array<i64: 1>, scalar_prefetch = 0 : i64, scratch_operands = 1 : i64, tpu.core_type = #tpu.core_type<tc>, window_params = [{transform_indices = @transform_0, window_bounds = array<i64: 4, 512>}, {transform_indices = @transform_1, window_bounds = array<i64: 4, 512>}, {transform_indices = @transform_2, window_bounds = array<i64: 1, 1>}]} {
    %c0_i32 = arith.constant 0 : i32
    %0 = arith.cmpi eq, %arg0, %c0_i32 : i32
    %1 = arith.extui %0 : i1 to i32
    %c0_i32_0 = arith.constant 0 : i32
    %2 = arith.cmpi ne, %1, %c0_i32_0 : i32
    scf.if %2 {
      %cst_10 = arith.constant 0.000000e+00 : f32
      %c0_11 = arith.constant 0 : index
      %c0_12 = arith.constant 0 : index
      %17 = memref.load %arg4[%c0_11, %c0_12] : memref<1x1xf32, #tpu.memory_space<smem>>
      memref.store %cst_10, %arg4[%c0_11, %c0_12] : memref<1x1xf32, #tpu.memory_space<smem>>
    } else {
    }
    %c0 = arith.constant 0 : index
    %c0_1 = arith.constant 0 : index
    %3 = vector.load %arg1[%c0, %c0_1] : memref<4x512xf32, #tpu.memory_space<vmem>>, vector<4x512xf32>
    %c0_2 = arith.constant 0 : index
    %c0_3 = arith.constant 0 : index
    %4 = vector.load %arg2[%c0_2, %c0_3] : memref<4x512xf32, #tpu.memory_space<vmem>>, vector<4x512xf32>
    %5 = arith.subf %3, %4 : vector<4x512xf32>
    %c0_4 = arith.constant 0 : index
    %c0_5 = arith.constant 0 : index
    %6 = memref.load %arg4[%c0_4, %c0_5] : memref<1x1xf32, #tpu.memory_space<smem>>
    %7 = arith.mulf %5, %5 : vector<4x512xf32>
    %8 = vector.shape_cast %7 : vector<4x512xf32> to vector<1x4x512xf32>
    %cst = arith.constant dense<0.000000e+00> : vector<1xf32>
    %9 = vector.multi_reduction <add>, %8, %cst [1, 2] : vector<1x4x512xf32> to vector<1xf32>
    %10 = vector.shape_cast %9 : vector<1xf32> to vector<1x1x1xf32>
    %11 = vector.extract %10[0, 0, 0] : f32 from vector<1x1x1xf32>
    %12 = arith.addf %6, %11 : f32
    %c0_6 = arith.constant 0 : index
    %c0_7 = arith.constant 0 : index
    %13 = memref.load %arg4[%c0_6, %c0_7] : memref<1x1xf32, #tpu.memory_space<smem>>
    memref.store %12, %arg4[%c0_6, %c0_7] : memref<1x1xf32, #tpu.memory_space<smem>>
    %c0_i32_8 = arith.constant 0 : i32
    %14 = arith.cmpi eq, %arg0, %c0_i32_8 : i32
    %15 = arith.extui %14 : i1 to i32
    %c0_i32_9 = arith.constant 0 : i32
    %16 = arith.cmpi ne, %15, %c0_i32_9 : i32
    scf.if %16 {
      %c0_10 = arith.constant 0 : index
      %c0_11 = arith.constant 0 : index
      %17 = memref.load %arg4[%c0_10, %c0_11] : memref<1x1xf32, #tpu.memory_space<smem>>
      %c0_12 = arith.constant 0 : index
      %c0_13 = arith.constant 0 : index
      %18 = memref.load %arg3[%c0_12, %c0_13] : memref<1x1xf32, #tpu.memory_space<smem>>
      memref.store %17, %arg3[%c0_12, %c0_13] : memref<1x1xf32, #tpu.memory_space<smem>>
    } else {
    }
    return
  }
  func.func @transform_0(%arg0: i32) -> (i32, i32) {
    %c0_i32 = arith.constant 0 : i32
    %c0_i32_0 = arith.constant 0 : i32
    return %arg0, %c0_i32 : i32, i32
  }
  func.func @transform_1(%arg0: i32) -> (i32, i32) {
    %c0_i32 = arith.constant 0 : i32
    %c0_i32_0 = arith.constant 0 : i32
    return %arg0, %c0_i32 : i32, i32
  }
  func.func @transform_2(%arg0: i32) -> (i32, i32) {
    %c0_i32 = arith.constant 0 : i32
    %c0_i32_0 = arith.constant 0 : i32
    %c0_i32_1 = arith.constant 0 : i32
    return %c0_i32, %c0_i32_0 : i32, i32
  }
}

</mosaic_0001>

<llo_original>
// kernel: tpu_custom_call.1
$region0: #{tpu_custom_call.1}
  #allocation0 [shape = 'u32[]', space=smem, size = 0x4, offset = 0x4, fixed_abs, tag = 'smem constant byte address 0x4 - core index']
  #allocation1 [shape = 'u32[144,128]{1,0:T(1,128)}', space=vmem, size = 0x12000, scoped, tag = 'internal scratch']
  #allocation2 [shape = 'f32[1,1]{1,0:T(1,128)}', space=smem, size = 0x200, scoped, tag = 'scratch operand']
  %s0 = inlined_call_operand.hbm [shape: f32[4,512], index: 0, kind: input, shape index: {}]
  %s1 = inlined_call_operand.hbm [shape: f32[4,512], index: 1, kind: input, shape index: {}]
  %s2 = inlined_call_operand.hbm [shape: f32[1,1], index: 2, kind: output, shape index: {}]
  %s3 = sld [smem:[#allocation0]]
  $region34: #{tpu_custom_call.1} parent=0
    _
  %s5 = ssub.s32 1, %s3
  %s6 = scalar_select 0, %s5, %s3
  $region1: #{tpu_custom_call.1} parent=0
    #allocation3 [shape = 'u8[8192]{0}', space=vmem, size = 0x2000, scoped, tag = 'input window, operand 0, single buffered']
    #allocation4 [shape = 's32[1]{0}', space=sflag, size = 0x4, scoped, tag = 'scoped memory for tpu_custom_call.1']
    #allocation5 [shape = 's32[1]{0}', space=sflag, size = 0x4, scoped, tag = 'scoped memory for tpu_custom_call.1']
    #allocation6 [shape = 'u8[8192]{0}', space=vmem, size = 0x2000, scoped, tag = 'input window, operand 1, single buffered']
    #allocation7 [shape = 's32[1]{0}', space=sflag, size = 0x4, scoped, tag = 'scoped memory for tpu_custom_call.1']
    #allocation8 [shape = 'u8[512]{0}', space=smem, size = 0x200, scoped, tag = 'output window, operand 0, single buffered']
    %7 = vsyncpa [#allocation4], 0
    %8 = vsyncpa [#allocation7], 0
    %9 = vsyncpa [#allocation5], 0
    // Predicated region
    $region2: #{tpu_custom_call.1} parent=1 // pred_check
      _
    $region3: #{tpu_custom_call.1} parent=1 // pred_check_branch
      %11 = sbr.rel (0) target = $region5
    $region4: #{tpu_custom_call.1} parent=1 // pred_region
      %s13 = ssub.s32 256, 256
      %14 = vsyncadd [#allocation4], %s13
      %s16 = sshll.u32 [#allocation3], 4
      %s17 = int_to_ptr.vmem [resolvable:$true] %s16
      %19 = dma.hbm_to_vmem [thread:$0]  %s0, 256, %s17, [#allocation4]
    $region5: #{tpu_custom_call.1} parent=1 // pred_fallthru
      _
    // Predicated region
    $region6: #{tpu_custom_call.1} parent=1 // pred_check
      _
    $region7: #{tpu_custom_call.1} parent=1 // pred_check_branch
      %21 = sbr.rel (0) target = $region9
    $region8: #{tpu_custom_call.1} parent=1 // pred_region
      %s23 = ssub.s32 256, 256
      %24 = vsyncadd [#allocation7], %s23
      %s26 = sshll.u32 [#allocation6], 4
      %s27 = int_to_ptr.vmem [resolvable:$true] %s26
      %29 = dma.hbm_to_vmem [thread:$0]  %s1, 256, %s27, [#allocation7]
    $region9: #{tpu_custom_call.1} parent=1 // pred_fallthru
      _
    // Predicated region
    $region10: #{tpu_custom_call.1} parent=1 // pred_check
      _
    $region11: #{tpu_custom_call.1} parent=1 // pred_check_branch
      %31 = sbr.rel (0) target = $region13
    $region12: #{tpu_custom_call.1} parent=1 // pred_region
      %32 = dma.done [#allocation4], 256
    $region13: #{tpu_custom_call.1} parent=1 // pred_fallthru
      _
    // Predicated region
    $region14: #{tpu_custom_call.1} parent=1 // pred_check
      _
    $region15: #{tpu_custom_call.1} parent=1 // pred_check_branch
      %34 = sbr.rel (0) target = $region17
    $region16: #{tpu_custom_call.1} parent=1 // pred_region
      %35 = dma.done [#allocation7], 256
    $region17: #{tpu_custom_call.1} parent=1 // pred_fallthru
      _
    %p36 = scmp.eq.s32.totalorder 0, 0
    // Predicated region
    $region18: #{tpu_custom_call.1} parent=1 // pred_check
      %p37 = pneg %p36
    $region19: #{tpu_custom_call.1} parent=1 // pred_check_branch
      %39 = sbr.rel (%p37) target = $region21
    $region20: #{tpu_custom_call.1} parent=1 // pred_region
      %s40 = scalar_lea.smem [#allocation2], 0
      %41 = sst [smem:[%s40]] 0.0
    $region21: #{tpu_custom_call.1} parent=1 // pred_fallthru
      _
    %v42 = vld [vmem:[#allocation3] sm:$0xff]
    %v43 = vld [vmem:[#allocation3 + $0x8] sm:$0xff]
    %v44 = vld [vmem:[#allocation6] sm:$0xff]
    %v45 = vld [vmem:[#allocation6 + $0x8] sm:$0xff]
    %v46 = vsub.f32 %v42, %v44
    %v47 = vsub.f32 %v43, %v45
    %s48 = sld [smem:[#allocation2]]
    %v49 = vmul.f32 %v46, %v46
    %v50 = vmul.f32 %v47, %v47
    %v53 = vcombine.high %v49, %v49
    %v54 = vcombine.high %v50, %v50
    %vm57 = vcmask 1043456
    %v58 = vsel %vm57, %v49, 0.0
    %v59 = vsel %vm57, %v53, 0.0
    %v60 = vadd.f32 %v58, %v59
    %v61 = vsel %vm57, %v50, 0.0
    %v62 = vadd.f32 %v60, %v61
    %v63 = vsel %vm57, %v54, 0.0
    %v64 = vadd.f32 %v62, %v63
    %65 = vadd.xlane.f32.xlu0 %v64
    %v66 = vpop.xlane.xlu0 %65
    %v67 = vrot.slane %v66, 4
    %v68 = vadd.f32 %v66, %v67
    %v69 = vrot.slane %v68, 2
    %v70 = vadd.f32 %v68, %v69
    %v71 = vrot.slane %v70, 1
    %v72 = vadd.f32 %v70, %v71
    %s73 = vtos %v72
    %s74 = sadd.f32 %s48, %s73
    %s75 = scalar_lea.smem [#allocation2], 0
    %76 = sst [smem:[%s75]] %s74
    // Predicated region
    $region22: #{tpu_custom_call.1} parent=1 // pred_check
      %p77 = pneg %p36
    $region23: #{tpu_custom_call.1} parent=1 // pred_check_branch
      %79 = sbr.rel (%p77) target = $region25
    $region24: #{tpu_custom_call.1} parent=1 // pred_region
      %s80 = sld [smem:[#allocation2]]
      %s81 = scalar_lea.smem [#allocation8], 0
      %82 = sst [smem:[%s81]] %s80
    $region25: #{tpu_custom_call.1} parent=1 // pred_fallthru
      _
    // Predicated region
    $region26: #{tpu_custom_call.1} parent=1 // pred_check
      _
    $region27: #{tpu_custom_call.1} parent=1 // pred_check_branch
      %84 = sbr.rel (0) target = $region29
    $region28: #{tpu_custom_call.1} parent=1 // pred_region
      %s86 = ssub.s32 16, 16
      %87 = vsyncadd [#allocation5], %s86
      %90 = dma.smem_to_hbm [#allocation8], 16, %s2, [#allocation5]
    $region29: #{tpu_custom_call.1} parent=1 // pred_fallthru
      _
    // Predicated region
    $region30: #{tpu_custom_call.1} parent=1 // pred_check
      _
    $region31: #{tpu_custom_call.1} parent=1 // pred_check_branch
      %92 = sbr.rel (0) target = $region33
    $region32: #{tpu_custom_call.1} parent=1 // pred_region
      %93 = dma.done [#allocation5], 16
    $region33: #{tpu_custom_call.1} parent=1 // pred_fallthru
      _
    %94 = sfence
    %95 = vsyncpa [#allocation4], 1
    %96 = vsyncpa [#allocation7], 1
    %97 = vsyncpa [#allocation5], 1

</llo_original>
